<compile_context>
chip_gen: v7x
topology: tpu7x:2x2x1
jax: 0.10.0
libtpu: 0.0.40
codegen_flags: <defaults>
</compile_context>

<pallas_src>
import jax
import jax.numpy as jnp
from jax.experimental import pallas as pl
from jax.experimental.pallas import tpu as pltpu


def _round_up(x, m):
    return ((x + m - 1) // m) * m


def mlp_softmax_kernel(x_ref, w1_ref, b1_ref, w2_ref, b2_ref, w3_ref, b3_ref,
                       o_ref):
    x = x_ref[...]  # (4, TB) f32 — batch on the lane axis

    # cov1: Linear(4 -> 8) + ReLU  (+ Dropout, identity in eval mode)
    h1 = jnp.dot(w1_ref[...], x, preferred_element_type=jnp.float32) + b1_ref[...]
    h1 = jnp.maximum(h1, 0.0)
    # TODO(synk): nn.Dropout(p=0.5) training-mode mask not implemented
    # (eval-mode identity); would use pltpu.prng_seed + pltpu.prng_random_bits.

    # cov2: Linear(8 -> 10) + ReLU
    h2 = jnp.dot(w2_ref[...], h1, preferred_element_type=jnp.float32) + b2_ref[...]
    h2 = jnp.maximum(h2, 0.0)

    # Linear: Linear(10 -> 3)
    logits = jnp.dot(w3_ref[...], h2, preferred_element_type=jnp.float32) + b3_ref[...]

    # softmax over the feature axis (sublane axis -> cheap XLU reduce).
    m = jnp.max(logits, axis=0, keepdims=True)
    e = jnp.exp(logits - m)
    denom = jnp.sum(e, axis=0, keepdims=True)
    o_ref[...] = (e / denom).astype(o_ref.dtype)  # exact divide; cost hidden under DMA


def mlp_forward_feature_major(x_fm, params, *, block_batch=65536):
    """Preferred entry point (no layout re-materialization around the kernel).

    x_fm: (4, N) float32, feature-major. Returns (3, N) softmax probabilities.
    """
    w1, b1, w2, b2, w3, b3 = params
    in_features, n = x_fm.shape
    out_features = w3.shape[0]

    # Only pad when the whole batch is smaller than one 128-lane vreg row;
    # otherwise rely on ragged (masked) final blocks — no wrapper-side pad.
    n_orig = n
    if n < 128:
        x_fm = jnp.pad(x_fm, ((0, 0), (0, 128 - n)))
        n = 128

    # Batch tile on the lane axis:
    #  - multiple of 128, large enough to amortize ~0.35 us/step overhead,
    #  - capped at 128K lanes (double-buffered blocks ~= 128*tb bytes, well
    #    inside v7x's 64 MiB physical VMEM),
    #  - split so big inputs give >= 2 grid steps for the "parallel" batch axis
    #    (feeds both v7x TensorCores).
    tb_cap = min(int(block_batch), 131072)
    tb = min(tb_cap, _round_up(n, 128))
    if n >= 4096:
        tb = min(tb, _round_up(pl.cdiv(n, 2), 128))
    tb = max(128, (tb // 128) * 128)

    grid = (pl.cdiv(n, tb),)  # ragged final block: OOB lanes are masked on store

    # Per-step VMEM: x block (4,tb)->8 sublanes + out block (3,tb)->8 sublanes,
    # each double-buffered => ~128*tb bytes (+ tiny resident params).
    vmem_limit = int(max(32 << 20, 128 * tb + (2 << 20)))

    resident = lambda a: pl.BlockSpec(a.shape, lambda i: tuple(0 for _ in a.shape))

    out = pl.pallas_call(
        mlp_softmax_kernel,
        out_shape=jax.ShapeDtypeStruct((out_features, n), jnp.float32),
        grid=grid,
        in_specs=[
            pl.BlockSpec((in_features, tb), lambda i: (0, i)),   # x tile
            resident(w1), resident(b1),
            resident(w2), resident(b2),
            resident(w3), resident(b3),
        ],
        out_specs=pl.BlockSpec((out_features, tb), lambda i: (0, i)),
        compiler_params=pltpu.CompilerParams(
            dimension_semantics=("parallel",),
            vmem_limit_bytes=vmem_limit),
    )(x_fm, w1, b1, w2, b2, w3, b3)

    return out if n == n_orig else out[:, :n_orig]


def mlp_forward(x, params, *, block_batch=65536):
    """PyTorch-layout convenience wrapper: x (N, 4) -> (N, 3).

    For bandwidth-critical use, call mlp_forward_feature_major directly with
    (4, N) input to avoid the transposes around the kernel.
    """
    return mlp_forward_feature_major(x.T, params, block_batch=block_batch).T


def init_params(key):
    # PyTorch-Linear-like uniform init, weights stored as (out, in),
    # biases stored as (out, 1) for lane-axis broadcast inside the kernel.
    k = jax.random.split(key, 6)

    def lin(kw, kb, fan_in, fan_out):
        bound = 1.0 / jnp.sqrt(fan_in)
        w = jax.random.uniform(kw, (fan_out, fan_in), jnp.float32, -bound, bound)
        b = jax.random.uniform(kb, (fan_out, 1), jnp.float32, -bound, bound)
        return w, b

    w1, b1 = lin(k[0], k[1], 4, 8)
    w2, b2 = lin(k[2], k[3], 8, 10)
    w3, b3 = lin(k[4], k[5], 10, 3)
    return (w1, b1, w2, b2, w3, b3)


def reference_forward(x, params):
    w1, b1, w2, b2, w3, b3 = params
    h1 = jnp.maximum(x @ w1.T + b1.T, 0.0)
    h2 = jnp.maximum(h1 @ w2.T + b2.T, 0.0)
    logits = h2 @ w3.T + b3.T
    return jax.nn.softmax(logits, axis=1)


if __name__ == "__main__":
    key = jax.random.PRNGKey(0)
    kx, kp, kx2 = jax.random.split(key, 3)
    params = init_params(kp)

    # Small case, PyTorch layout (N, 4): matches the module's per-sample shape.
    batch = 8
    x = jax.random.normal(kx, (batch, 4), dtype=jnp.float32)
    out = jax.block_until_ready(mlp_forward(x, params))
    ref = reference_forward(x, params)
    assert out.shape == (batch, 3)
    assert float(jnp.max(jnp.abs(out - ref))) < 1e-2
    assert float(jnp.max(jnp.abs(jnp.sum(out, axis=1) - 1.0))) < 1e-3

    # Larger, non-multiple-of-tile batch via the preferred feature-major path
    # (no wrapper transpose/pad): exercises the multi-step grid, resident
    # params, and the ragged (masked) final block.
    batch2 = 1000
    x2_fm = jax.random.normal(kx2, (4, batch2), dtype=jnp.float32)
    out2 = jax.block_until_ready(
        mlp_forward_feature_major(x2_fm, params, block_batch=256))
    ref2 = reference_forward(x2_fm.T, params)
    assert out2.shape == (3, batch2)
    assert float(jnp.max(jnp.abs(out2.T - ref2))) < 1e-2
    assert float(jnp.max(jnp.abs(jnp.sum(out2, axis=0) - 1.0))) < 1e-3

    print("KERNEL_OK")
</pallas_src>

<mosaic_0001>
module attributes {stable_mosaic.version = 11 : i64} {
  func.func @mlp_softmax_kernel(%arg0: i32, %arg1: memref<4x128xf32, #tpu.memory_space<vmem>>, %arg2: memref<8x4xf32, #tpu.memory_space<vmem>>, %arg3: memref<8x1xf32, #tpu.memory_space<vmem>>, %arg4: memref<10x8xf32, #tpu.memory_space<vmem>>, %arg5: memref<10x1xf32, #tpu.memory_space<vmem>>, %arg6: memref<3x10xf32, #tpu.memory_space<vmem>>, %arg7: memref<3x1xf32, #tpu.memory_space<vmem>>, %arg8: memref<3x128xf32, #tpu.memory_space<vmem>>) attributes {dimension_semantics = [#tpu.dimension_semantics<parallel>], iteration_bounds = array<i64: 1>, scalar_prefetch = 0 : i64, scratch_operands = 0 : i64, tpu.core_type = #tpu.core_type<tc>, window_params = [{transform_indices = @transform_0, window_bounds = array<i64: 4, 128>}, {pipeline_mode = #tpu.pipeline_mode<synchronous>, transform_indices = @transform_1, window_bounds = array<i64: 8, 4>}, {pipeline_mode = #tpu.pipeline_mode<synchronous>, transform_indices = @transform_2, window_bounds = array<i64: 8, 1>}, {pipeline_mode = #tpu.pipeline_mode<synchronous>, transform_indices = @transform_3, window_bounds = array<i64: 10, 8>}, {pipeline_mode = #tpu.pipeline_mode<synchronous>, transform_indices = @transform_4, window_bounds = array<i64: 10, 1>}, {pipeline_mode = #tpu.pipeline_mode<synchronous>, transform_indices = @transform_5, window_bounds = array<i64: 3, 10>}, {pipeline_mode = #tpu.pipeline_mode<synchronous>, transform_indices = @transform_6, window_bounds = array<i64: 3, 1>}, {transform_indices = @transform_7, window_bounds = array<i64: 3, 128>}]} {
    %c0 = arith.constant 0 : index
    %c0_0 = arith.constant 0 : index
    %0 = vector.load %arg1[%c0, %c0_0] : memref<4x128xf32, #tpu.memory_space<vmem>>, vector<4x128xf32>
    %c0_1 = arith.constant 0 : index
    %c0_2 = arith.constant 0 : index
    %1 = vector.load %arg2[%c0_1, %c0_2] : memref<8x4xf32, #tpu.memory_space<vmem>>, vector<8x4xf32>
    %cst = arith.constant dense<0.000000e+00> : vector<8x128xf32>
    %2 = tpu.matmul %1, %0, %cst {dimension_numbers = #tpu.dot_dimension_numbers<[1], [0], [0], [1], [0, 0, 1, 1], [], []>} : vector<8x4xf32>, vector<4x128xf32>, vector<8x128xf32> -> vector<8x128xf32>
    %c0_3 = arith.constant 0 : index
    %c0_4 = arith.constant 0 : index
    %3 = vector.load %arg3[%c0_3, %c0_4] : memref<8x1xf32, #tpu.memory_space<vmem>>, vector<8x1xf32>
    %4 = vector.broadcast %3 : vector<8x1xf32> to vector<8x128xf32>
    %5 = arith.addf %2, %4 : vector<8x128xf32>
    %cst_5 = arith.constant 0.000000e+00 : f32
    %6 = vector.broadcast %cst_5 : f32 to vector<8x128xf32>
    %7 = arith.maximumf %5, %6 : vector<8x128xf32>
    %c0_6 = arith.constant 0 : index
    %c0_7 = arith.constant 0 : index
    %8 = vector.load %arg4[%c0_6, %c0_7] : memref<10x8xf32, #tpu.memory_space<vmem>>, vector<10x8xf32>
    %cst_8 = arith.constant dense<0.000000e+00> : vector<10x128xf32>
    %9 = tpu.matmul %8, %7, %cst_8 {dimension_numbers = #tpu.dot_dimension_numbers<[1], [0], [0], [1], [0, 0, 1, 1], [], []>} : vector<10x8xf32>, vector<8x128xf32>, vector<10x128xf32> -> vector<10x128xf32>
    %c0_9 = arith.constant 0 : index
    %c0_10 = arith.constant 0 : index
    %10 = vector.load %arg5[%c0_9, %c0_10] : memref<10x1xf32, #tpu.memory_space<vmem>>, vector<10x1xf32>
    %11 = vector.broadcast %10 : vector<10x1xf32> to vector<10x128xf32>
    %12 = arith.addf %9, %11 : vector<10x128xf32>
    %cst_11 = arith.constant 0.000000e+00 : f32
    %13 = vector.broadcast %cst_11 : f32 to vector<10x128xf32>
    %14 = arith.maximumf %12, %13 : vector<10x128xf32>
    %c0_12 = arith.constant 0 : index
    %c0_13 = arith.constant 0 : index
    %15 = vector.load %arg6[%c0_12, %c0_13] : memref<3x10xf32, #tpu.memory_space<vmem>>, vector<3x10xf32>
    %cst_14 = arith.constant dense<0.000000e+00> : vector<3x128xf32>
    %16 = tpu.matmul %15, %14, %cst_14 {dimension_numbers = #tpu.dot_dimension_numbers<[1], [0], [0], [1], [0, 0, 1, 1], [], []>} : vector<3x10xf32>, vector<10x128xf32>, vector<3x128xf32> -> vector<3x128xf32>
    %c0_15 = arith.constant 0 : index
    %c0_16 = arith.constant 0 : index
    %17 = vector.load %arg7[%c0_15, %c0_16] : memref<3x1xf32, #tpu.memory_space<vmem>>, vector<3x1xf32>
    %18 = vector.broadcast %17 : vector<3x1xf32> to vector<3x128xf32>
    %19 = arith.addf %16, %18 : vector<3x128xf32>
    %cst_17 = arith.constant dense<0xFF800000> : vector<128xf32>
    %20 = vector.multi_reduction <maximumf>, %19, %cst_17 [0] : vector<3x128xf32> to vector<128xf32>
    %21 = vector.shape_cast %20 : vector<128xf32> to vector<1x128xf32>
    %22 = vector.broadcast %21 : vector<1x128xf32> to vector<3x128xf32>
    %23 = arith.subf %19, %22 : vector<3x128xf32>
    %24 = math.exp %23 : vector<3x128xf32>
    %cst_18 = arith.constant dense<0.000000e+00> : vector<128xf32>
    %25 = vector.multi_reduction <add>, %24, %cst_18 [0] : vector<3x128xf32> to vector<128xf32>
    %26 = vector.shape_cast %25 : vector<128xf32> to vector<1x128xf32>
    %27 = vector.broadcast %26 : vector<1x128xf32> to vector<3x128xf32>
    %28 = arith.divf %24, %27 : vector<3x128xf32>
    %c0_19 = arith.constant 0 : index
    %c0_20 = arith.constant 0 : index
    %29 = vector.load %arg8[%c0_19, %c0_20] : memref<3x128xf32, #tpu.memory_space<vmem>>, vector<3x128xf32>
    tpu.vector_store %arg8[%c0_19, %c0_20], %28 {strides = array<i32>} : memref<3x128xf32, #tpu.memory_space<vmem>>, vector<3x128xf32>,
    return
  }
  func.func @transform_0(%arg0: i32) -> (i32, i32) {
    %c0_i32 = arith.constant 0 : i32
    %c0_i32_0 = arith.constant 0 : i32
    return %c0_i32, %arg0 : i32, i32
  }
  func.func @transform_1(%arg0: i32) -> (i32, i32) {
    %c0_i32 = arith.constant 0 : i32
    %c0_i32_0 = arith.constant 0 : i32
    %c0_i32_1 = arith.constant 0 : i32
    return %c0_i32, %c0_i32_0 : i32, i32
  }
  func.func @transform_2(%arg0: i32) -> (i32, i32) {
    %c0_i32 = arith.constant 0 : i32
    %c0_i32_0 = arith.constant 0 : i32
    %c0_i32_1 = arith.constant 0 : i32
    return %c0_i32, %c0_i32_0 : i32, i32
  }
  func.func @transform_3(%arg0: i32) -> (i32, i32) {
    %c0_i32 = arith.constant 0 : i32
    %c0_i32_0 = arith.constant 0 : i32
    %c0_i32_1 = arith.constant 0 : i32
    return %c0_i32, %c0_i32_0 : i32, i32
  }
  func.func @transform_4(%arg0: i32) -> (i32, i32) {
    %c0_i32 = arith.constant 0 : i32
    %c0_i32_0 = arith.constant 0 : i32
    %c0_i32_1 = arith.constant 0 : i32
    return %c0_i32, %c0_i32_0 : i32, i32
  }
  func.func @transform_5(%arg0: i32) -> (i32, i32) {
    %c0_i32 = arith.constant 0 : i32
    %c0_i32_0 = arith.constant 0 : i32
    %c0_i32_1 = arith.constant 0 : i32
    return %c0_i32, %c0_i32_0 : i32, i32
  }
  func.func @transform_6(%arg0: i32) -> (i32, i32) {
    %c0_i32 = arith.constant 0 : i32
    %c0_i32_0 = arith.constant 0 : i32
    %c0_i32_1 = arith.constant 0 : i32
    return %c0_i32, %c0_i32_0 : i32, i32
  }
  func.func @transform_7(%arg0: i32) -> (i32, i32) {
    %c0_i32 = arith.constant 0 : i32
    %c0_i32_0 = arith.constant 0 : i32
    return %c0_i32, %arg0 : i32, i32
  }
}

</mosaic_0001>

<llo_original>
// kernel: tpu_custom_call.1
$region0: #{tpu_custom_call.1}
  #allocation0 [shape = 'u32[]', space=smem, size = 0x4, offset = 0x4, fixed_abs, tag = 'smem constant byte address 0x4 - core index']
  #allocation1 [shape = 'u32[144,128]{1,0:T(1,128)}', space=vmem, size = 0x12000, scoped, tag = 'internal scratch']
  %s0 = inlined_call_operand.vmem [shape: f32[4,128], index: 0, kind: input, shape index: {}]
  %s1 = inlined_call_operand.vmem [shape: f32[8,4], index: 1, kind: input, shape index: {}]
  %s2 = inlined_call_operand.vmem [shape: f32[8,1], index: 2, kind: input, shape index: {}]
  %s3 = inlined_call_operand.vmem [shape: f32[10,8], index: 3, kind: input, shape index: {}]
  %s4 = inlined_call_operand.vmem [shape: f32[10,1], index: 4, kind: input, shape index: {}]
  %s5 = inlined_call_operand.vmem [shape: f32[3,10], index: 5, kind: input, shape index: {}]
  %s6 = inlined_call_operand.vmem [shape: f32[3,1], index: 6, kind: input, shape index: {}]
  %s7 = inlined_call_operand.hbm [shape: f32[3,128], index: 7, kind: output, shape index: {}]
  %s8 = sld [smem:[#allocation0]]
  $region38: #{tpu_custom_call.1} parent=0
    _
  %s10 = ssub.s32 1, %s8
  %s11 = scalar_select 0, %s10, %s8
  $region1: #{tpu_custom_call.1} parent=0
    #allocation2 [shape = 'u8[2048]{0}', space=vmem, size = 0x800, scoped, tag = 'output window, operand 0, single buffered']
    #allocation3 [shape = 's32[1]{0}', space=sflag, size = 0x4, scoped, tag = 'scoped memory for tpu_custom_call.1']
    %12 = vsyncpa [#allocation3], 0
    // Predicated region
    $region2: #{tpu_custom_call.1} parent=1 // pred_check
      _
    $region3: #{tpu_custom_call.1} parent=1 // pred_check_branch
      %14 = sbr.rel (0) target = $region5
    $region4: #{tpu_custom_call.1} parent=1 // pred_region
      _
    $region5: #{tpu_custom_call.1} parent=1 // pred_fallthru
      _
    // Predicated region
    $region6: #{tpu_custom_call.1} parent=1 // pred_check
      _
    $region7: #{tpu_custom_call.1} parent=1 // pred_check_branch
      %16 = sbr.rel (0) target = $region9
    $region8: #{tpu_custom_call.1} parent=1 // pred_region
      _
    $region9: #{tpu_custom_call.1} parent=1 // pred_fallthru
      _
    // Predicated region
    $region10: #{tpu_custom_call.1} parent=1 // pred_check
      _
    $region11: #{tpu_custom_call.1} parent=1 // pred_check_branch
      %18 = sbr.rel (0) target = $region13
    $region12: #{tpu_custom_call.1} parent=1 // pred_region
      _
    $region13: #{tpu_custom_call.1} parent=1 // pred_fallthru
      _
    // Predicated region
    $region14: #{tpu_custom_call.1} parent=1 // pred_check
      _
    $region15: #{tpu_custom_call.1} parent=1 // pred_check_branch
      %20 = sbr.rel (0) target = $region17
    $region16: #{tpu_custom_call.1} parent=1 // pred_region
      _
    $region17: #{tpu_custom_call.1} parent=1 // pred_fallthru
      _
    // Predicated region
    $region18: #{tpu_custom_call.1} parent=1 // pred_check
      _
    $region19: #{tpu_custom_call.1} parent=1 // pred_check_branch
      %22 = sbr.rel (0) target = $region21
    $region20: #{tpu_custom_call.1} parent=1 // pred_region
      _
    $region21: #{tpu_custom_call.1} parent=1 // pred_fallthru
      _
    // Predicated region
    $region22: #{tpu_custom_call.1} parent=1 // pred_check
      _
    $region23: #{tpu_custom_call.1} parent=1 // pred_check_branch
      %24 = sbr.rel (0) target = $region25
    $region24: #{tpu_custom_call.1} parent=1 // pred_region
      _
    $region25: #{tpu_custom_call.1} parent=1 // pred_fallthru
      _
    // Predicated region
    $region26: #{tpu_custom_call.1} parent=1 // pred_check
      _
    $region27: #{tpu_custom_call.1} parent=1 // pred_check_branch
      %26 = sbr.rel (0) target = $region29
    $region28: #{tpu_custom_call.1} parent=1 // pred_region
      _
    $region29: #{tpu_custom_call.1} parent=1 // pred_fallthru
      _
    %v27 = vld [vmem:[%s0] sm:$0xf]
    %v28 = vld [vmem:[%s1] sm:$0xff]
    %v29 = vld [vmem:[%s2] sm:$0xff]
    %31 = vset.pattern.permute.xlu0 0
    %32 = vperm.xlu0 %31, %v29
    %v33 = vpop.permute.xlu0 %32
    %vm35 = vcmask 31744
    %v37 = vsel %vm35, %v28, 0
    %vm39 = vcmask 1043456
    %v41 = vsel %vm39, %v27, 0
    %43 = vmatprep.subr.mxu0 0.0
    %44 = vmatpush1.msra.mxu0 %v41
    %45 = vmatprep.subr.mxu0 0.0
    %46 = vmatpush1.msra.mxu0 0.0
    %47 = vmatprep.subr.mxu0 0.0
    %48 = vmatpush1.msra.mxu0 0.0
    %49 = vmatprep.subr.mxu0 0.0
    %50 = vmatpush1.msra.mxu0 0.0
    %51 = vmatprep.subr.mxu0 0.0
    %52 = vmatpush1.msra.mxu0 0.0
    %53 = vmatprep.subr.mxu0 0.0
    %54 = vmatpush1.msra.mxu0 0.0
    %55 = vmatprep.subr.mxu0 0.0
    %56 = vmatpush1.msra.mxu0 0.0
    %57 = vmatprep.subr.mxu0 0.0
    %58 = vmatpush1.msra.mxu0 0.0
    %59 = vmatprep.subr.mxu0 0.0
    %60 = vmatpush1.msra.mxu0 0.0
    %61 = vmatprep.subr.mxu0 0.0
    %62 = vmatpush1.msra.mxu0 0.0
    %63 = vmatprep.subr.mxu0 0.0
    %64 = vmatpush1.msra.mxu0 0.0
    %65 = vmatprep.subr.mxu0 0.0
    %66 = vmatpush1.msra.mxu0 0.0
    %67 = vmatprep.subr.mxu0 0.0
    %68 = vmatpush1.msra.mxu0 0.0
    %69 = vmatprep.subr.mxu0 0.0
    %70 = vmatpush1.msra.mxu0 0.0
    %71 = vmatprep.subr.mxu0 0.0
    %72 = vmatpush1.msra.mxu0 0.0
    %73 = vmatprep.subr.mxu0 0.0
    %74 = vmatpush1.msra.mxu0 0.0
    %75 = vmatprep.subr.mxu0 0.0
    %76 = vmatpush1.msra.mxu0 0.0
    %77 = vmatprep.subr.mxu0 0.0
    %78 = vmatpush1.msra.mxu0 0.0
    %79 = vmatprep.subr.mxu0 0.0
    %80 = vmatpush1.msra.mxu0 0.0
    %81 = vmatprep.subr.mxu0 0.0
    %82 = vmatpush1.msra.mxu0 0.0
    %83 = vmatprep.subr.mxu0 0.0
    %84 = vmatpush1.msra.mxu0 0.0
    %85 = vmatprep.subr.mxu0 0.0
    %86 = vmatpush1.msra.mxu0 0.0
    %87 = vmatprep.subr.mxu0 0.0
    %88 = vmatpush1.msra.mxu0 0.0
    %89 = vmatprep.subr.mxu0 0.0
    %90 = vmatpush1.msra.mxu0 0.0
    %91 = vmatprep.subr.mxu0 0.0
    %92 = vmatpush1.msra.mxu0 0.0
    %93 = vmatprep.subr.mxu0 0.0
    %94 = vmatpush1.msra.mxu0 0.0
    %95 = vmatprep.subr.mxu0 0.0
    %96 = vmatpush1.msra.mxu0 0.0
    %97 = vmatprep.subr.mxu0 0.0
    %98 = vmatpush1.msra.mxu0 0.0
    %99 = vmatprep.subr.mxu0 0.0
    %100 = vmatpush1.msra.mxu0 0.0
    %101 = vmatprep.subr.mxu0 0.0
    %102 = vmatpush1.msra.mxu0 0.0
    %103 = vmatprep.subr.mxu0 0.0
    %104 = vmatpush1.msra.mxu0 0.0
    %105 = vmatprep.subr.mxu0 0.0
    %106 = vmatpush1.msra.mxu0 0.0
    %107 = vmatprep.mubr.f32.mxu0 0.0
    %108 = vmatmul.mubr.f32.gmra.mrb[0].mxu0 %v37
    %v109 = vpop.f32.mrb[0].mxu0
    %v110 = vadd.f32 %v33, %v109
    %v111 = vpop.f32.mrb[0].mxu0
    %112 = vdwg.mxu0
    %v113 = vmax.f32 %v110, 0.0
    %v114 = vld [vmem:[%s3] sm:$0xff]
    %v115 = vld [vmem:[%s3 + $0x8] sm:$0x3]
    %v116 = vld [vmem:[%s4] sm:$0xff]
    %v117 = vld [vmem:[%s4 + $0x8] sm:$0x3]
    %119 = vset.pattern.permute.xlu0 0
    %120 = vperm.xlu0 %119, %v116
    %v121 = vpop.permute.xlu0 %120
    %124 = vset.pattern.permute.xlu0 0
    %125 = vperm.xlu0 %124, %v117
    %v126 = vpop.permute.xlu0 %125
    %vm128 = vcmask 64512
    %v130 = vsel %vm128, %v114, 0
    %v133 = vsel %vm128, %v115, 0
    %135 = vmatprep.subr.mxu0 0.0
    %136 = vmatpush1.msra.mxu0 %v113
    %137 = vmatprep.subr.mxu0 0.0
    %138 = vmatpush1.msra.mxu0 0.0
    %139 = vmatprep.subr.mxu0 0.0
    %140 = vmatpush1.msra.mxu0 0.0
    %141 = vmatprep.subr.mxu0 0.0
    %142 = vmatpush1.msra.mxu0 0.0
    %143 = vmatprep.subr.mxu0 0.0
    %144 = vmatpush1.msra.mxu0 0.0
    %145 = vmatprep.subr.mxu0 0.0
    %146 = vmatpush1.msra.mxu0 0.0
    %147 = vmatprep.subr.mxu0 0.0
    %148 = vmatpush1.msra.mxu0 0.0
    %149 = vmatprep.subr.mxu0 0.0
    %150 = vmatpush1.msra.mxu0 0.0
    %151 = vmatprep.subr.mxu0 0.0
    %152 = vmatpush1.msra.mxu0 0.0
    %153 = vmatprep.subr.mxu0 0.0
    %154 = vmatpush1.msra.mxu0 0.0
    %155 = vmatprep.subr.mxu0 0.0
    %156 = vmatpush1.msra.mxu0 0.0
    %157 = vmatprep.subr.mxu0 0.0
    %158 = vmatpush1.msra.mxu0 0.0
    %159 = vmatprep.subr.mxu0 0.0
    %160 = vmatpush1.msra.mxu0 0.0
    %161 = vmatprep.subr.mxu0 0.0
    %162 = vmatpush1.msra.mxu0 0.0
    %163 = vmatprep.subr.mxu0 0.0
    %164 = vmatpush1.msra.mxu0 0.0
    %165 = vmatprep.subr.mxu0 0.0
    %166 = vmatpush1.msra.mxu0 0.0
    %167 = vmatprep.subr.mxu0 0.0
    %168 = vmatpush1.msra.mxu0 0.0
    %169 = vmatprep.subr.mxu0 0.0
    %170 = vmatpush1.msra.mxu0 0.0
    %171 = vmatprep.subr.mxu0 0.0
    %172 = vmatpush1.msra.mxu0 0.0
    %173 = vmatprep.subr.mxu0 0.0
    %174 = vmatpush1.msra.mxu0 0.0
    %175 = vmatprep.subr.mxu0 0.0
    %176 = vmatpush1.msra.mxu0 0.0
    %177 = vmatprep.subr.mxu0 0.0
    %178 = vmatpush1.msra.mxu0 0.0
    %179 = vmatprep.subr.mxu0 0.0
    %180 = vmatpush1.msra.mxu0 0.0
    %181 = vmatprep.subr.mxu0 0.0
    %182 = vmatpush1.msra.mxu0 0.0
    %183 = vmatprep.subr.mxu0 0.0
    %184 = vmatpush1.msra.mxu0 0.0
    %185 = vmatprep.subr.mxu0 0.0
    %186 = vmatpush1.msra.mxu0 0.0
    %187 = vmatprep.subr.mxu0 0.0
    %188 = vmatpush1.msra.mxu0 0.0
    %189 = vmatprep.subr.mxu0 0.0
    %190 = vmatpush1.msra.mxu0 0.0
    %191 = vmatprep.subr.mxu0 0.0
    %192 = vmatpush1.msra.mxu0 0.0
    %193 = vmatprep.subr.mxu0 0.0
    %194 = vmatpush1.msra.mxu0 0.0
    %195 = vmatprep.subr.mxu0 0.0
    %196 = vmatpush1.msra.mxu0 0.0
    %197 = vmatprep.subr.mxu0 0.0
    %198 = vmatpush1.msra.mxu0 0.0
    %199 = vmatprep.mubr.f32.mxu0 0.0
    %200 = vmatmul.mubr.f32.gmra.mrb[0].mxu0 %v130
    %v201 = vpop.f32.mrb[0].mxu0
    %v202 = vadd.f32 %v121, %v201
    %v203 = vpop.f32.mrb[0].mxu0
    %204 = vmatprep.mubr.f32.mxu0 0.0
    %205 = vmatmul.mubr.f32.gmra.mrb[0].mxu0 %v133
    %v206 = vpop.f32.mrb[0].mxu0
    %v207 = vadd.f32 %v126, %v206
    %v208 = vpop.f32.mrb[0].mxu0
    %209 = vdwg.mxu0
    %v210 = vmax.f32 %v202, 0.0
    %v211 = vmax.f32 %v207, 0.0
    %v212 = vld [vmem:[%s5] sm:$0x7]
    %v213 = vld [vmem:[%s6] sm:$0x7]
    %215 = vset.pattern.permute.xlu0 0
    %216 = vperm.xlu0 %215, %v213
    %v217 = vpop.permute.xlu0 %216
    %vm219 = vcmask 80896
    %v221 = vsel %vm219, %v212, 0
    %vm223 = vcmask 1041408
    %v225 = vsel %vm223, %v211, 0
    %227 = vmatprep.subr.mxu0 0.0
    %228 = vmatpush1.msra.mxu0 %v210
    %229 = vmatprep.subr.mxu0 0.0
    %230 = vmatpush1.msra.mxu0 %v225
    %231 = vmatprep.subr.mxu0 0.0
    %232 = vmatpush1.msra.mxu0 0.0
    %233 = vmatprep.subr.mxu0 0.0
    %234 = vmatpush1.msra.mxu0 0.0
    %235 = vmatprep.subr.mxu0 0.0
    %236 = vmatpush1.msra.mxu0 0.0
    %237 = vmatprep.subr.mxu0 0.0
    %238 = vmatpush1.msra.mxu0 0.0
    %239 = vmatprep.subr.mxu0 0.0
    %240 = vmatpush1.msra.mxu0 0.0
    %241 = vmatprep.subr.mxu0 0.0
    %242 = vmatpush1.msra.mxu0 0.0
    %243 = vmatprep.subr.mxu0 0.0
    %244 = vmatpush1.msra.mxu0 0.0
    %245 = vmatprep.subr.mxu0 0.0
    %246 = vmatpush1.msra.mxu0 0.0
    %247 = vmatprep.subr.mxu0 0.0
    %248 = vmatpush1.msra.mxu0 0.0
    %249 = vmatprep.subr.mxu0 0.0
    %250 = vmatpush1.msra.mxu0 0.0
    %251 = vmatprep.subr.mxu0 0.0
    %252 = vmatpush1.msra.mxu0 0.0
    %253 = vmatprep.subr.mxu0 0.0
    %254 = vmatpush1.msra.mxu0 0.0
    %255 = vmatprep.subr.mxu0 0.0
    %256 = vmatpush1.msra.mxu0 0.0
    %257 = vmatprep.subr.mxu0 0.0
    %258 = vmatpush1.msra.mxu0 0.0
    %259 = vmatprep.subr.mxu0 0.0
    %260 = vmatpush1.msra.mxu0 0.0
    %261 = vmatprep.subr.mxu0 0.0
    %262 = vmatpush1.msra.mxu0 0.0
    %263 = vmatprep.subr.mxu0 0.0
    %264 = vmatpush1.msra.mxu0 0.0
    %265 = vmatprep.subr.mxu0 0.0
    %266 = vmatpush1.msra.mxu0 0.0
    %267 = vmatprep.subr.mxu0 0.0
    %268 = vmatpush1.msra.mxu0 0.0
    %269 = vmatprep.subr.mxu0 0.0
    %270 = vmatpush1.msra.mxu0 0.0
    %271 = vmatprep.subr.mxu0 0.0
    %272 = vmatpush1.msra.mxu0 0.0
    %273 = vmatprep.subr.mxu0 0.0
    %274 = vmatpush1.msra.mxu0 0.0
    %275 = vmatprep.subr.mxu0 0.0
    %276 = vmatpush1.msra.mxu0 0.0
    %277 = vmatprep.subr.mxu0 0.0
    %278 = vmatpush1.msra.mxu0 0.0
    %279 = vmatprep.subr.mxu0 0.0
    %280 = vmatpush1.msra.mxu0 0.0
    %281 = vmatprep.subr.mxu0 0.0
    %282 = vmatpush1.msra.mxu0 0.0
    %283 = vmatprep.subr.mxu0 0.0
    %284 = vmatpush1.msra.mxu0 0.0
    %285 = vmatprep.subr.mxu0 0.0
    %286 = vmatpush1.msra.mxu0 0.0
    %287 = vmatprep.subr.mxu0 0.0
    %288 = vmatpush1.msra.mxu0 0.0
    %289 = vmatprep.subr.mxu0 0.0
    %290 = vmatpush1.msra.mxu0 0.0
    %291 = vmatprep.mubr.f32.mxu0 0.0
    %292 = vmatmul.mubr.f32.gmra.mrb[0].mxu0 %v221
    %v293 = vpop.f32.mrb[0].mxu0
    %v294 = vadd.f32 %v217, %v293
    %v295 = vpop.f32.mrb[0].mxu0
    %296 = vdwg.mxu0
    %vm297 = vcmask 1042432
    %v298 = vsel %vm297, %v294, -inf
    %v299 = vrot.slane %v298, 4
    %v300 = vmax.f32 %v298, %v299
    %v301 = vrot.slane %v300, 2
    %v302 = vmax.f32 %v300, %v301
    %v303 = vrot.slane %v302, 1
    %v304 = vmax.f32 %v302, %v303
    %v305 = vsub.f32 %v294, %v304
    %v306 = vmul.f32 %v305, 1.442695
    %v307 = vpow.pop %v306
    %v308 = vsel %vm297, %v307, 0.0
    %v309 = vrot.slane %v308, 4
    %v310 = vadd.f32 %v308, %v309
    %v311 = vrot.slane %v310, 2
    %v312 = vadd.f32 %v310, %v311
    %v313 = vrot.slane %v312, 1
    %v314 = vadd.f32 %v312, %v313
    %v315 = vrcp.pop %v314
    %v316 = vmul.f32 %v307, %v315
    %317 = vst [vmem:[#allocation2] sm:$0x7] %v316
    // Predicated region
    $region30: #{tpu_custom_call.1} parent=1 // pred_check
      _
    $region31: #{tpu_custom_call.1} parent=1 // pred_check_branch
      %319 = sbr.rel (0) target = $region33
    $region32: #{tpu_custom_call.1} parent=1 // pred_region
      %s321 = ssub.s32 64, 64
      %322 = vsyncadd [#allocation3], %s321
      %s324 = sshll.u32 [#allocation2], 4
      %s325 = int_to_ptr.vmem [resolvable:$true] %s324
      %327 = dma.vmem_to_hbm [thread:$0]  %s325, 64, %s7, [#allocation3]
    $region33: #{tpu_custom_call.1} parent=1 // pred_fallthru
      _
    // Predicated region
    $region34: #{tpu_custom_call.1} parent=1 // pred_check
      _
    $region35: #{tpu_custom_call.1} parent=1 // pred_check_branch
      %329 = sbr.rel (0) target = $region37
    $region36: #{tpu_custom_call.1} parent=1 // pred_region
      %330 = dma.done [#allocation3], 64
    $region37: #{tpu_custom_call.1} parent=1 // pred_fallthru
      _
    %331 = vsyncpa [#allocation3], 1

</llo_original>
